<compile_context>
chip_gen: v7x
topology: tpu7x:2x2x1
jax: 0.10.0
libtpu: 0.0.40
codegen_flags: <defaults>
</compile_context>

<pallas_src>
import jax
import jax.numpy as jnp
from jax.experimental import pallas as pl
from jax.experimental.pallas import tpu as pltpu  # noqa: F401  (TPU backend)


# ----------------------------- Fused Pallas kernel -----------------------------

def _transformer_kernel(x_ref, wv_ref, o_ref):
    """Entire batch + entire depth-deep stack in one kernel invocation.

    x_ref  : (B, S, D)       activations (f32)
    wv_ref : (depth, D, D)   bf16, already equal to -(tau*scale) * W0 @ W0^T per layer
    o_ref  : (B, S, D)       output
    """
    B, S, D = x_ref.shape
    depth = wv_ref.shape[0]

    x = x_ref[...].astype(jnp.float32)                              # (B, S, D) residual stream

    # Static unroll over depth is fine at depth<=4; switch to lax.fori_loop with
    # dynamic wv_ref[l] indexing if the stack gets deeper (vreg live ranges).
    for l in range(depth):
        wv = wv_ref[l]                                              # (D, D) bf16, tau*scale folded in
        # One MXU push over the flattened batch: (B*S, D) @ (D, D), f32 accumulate.
        y = jnp.dot(x.astype(jnp.bfloat16).reshape(B * S, D), wv,
                    preferred_element_type=jnp.float32).reshape(B, S, D)
        # attn = (ones(S,S) - eye(S)) * scale  =>  tau * attn @ y_raw
        #      == colsum_S(y) - y   (scale/tau already folded into wv; sum stays per-batch)
        x = (jnp.sum(y, axis=1, keepdims=True) - y) + x
    o_ref[...] = x.astype(o_ref.dtype)


def simple_transformer_forward(x, wp_stack, *, tau=1.0):
    """x: (B, S, D); wp_stack: (depth, D, D). Returns (B, S, D)."""
    B, S, D = x.shape
    depth = wp_stack.shape[0]
    scale = 1.0 / (S - 1)                                           # (x.size(1) - 1) ** -1

    # Hoist the batch-invariant weight prep out of the kernel (tiny one-time XLA work):
    #   W0 = 0.5*(wp + wp^T);  Wv' = -(tau*scale) * W0 @ W0^T   (bf16 for the MXU)
    w0 = 0.5 * (wp_stack + jnp.swapaxes(wp_stack, -1, -2))
    wv = (-(tau * scale)) * jnp.einsum('lij,lkj->lik', w0, w0)       # (depth, D, D) f32
    wv = wv.astype(jnp.bfloat16)

    flops = 2 * depth * B * S * D * D                                # x @ Wv per layer
    bytes_accessed = (x.size * x.dtype.itemsize                      # read x
                      + wv.size * 2                                  # read Wv (bf16)
                      + x.size * x.dtype.itemsize)                   # write out

    return pl.pallas_call(
        _transformer_kernel,
        out_shape=jax.ShapeDtypeStruct((B, S, D), x.dtype),
        grid=(1,),                                                   # whole batch in one step
        in_specs=[
            pl.BlockSpec((B, S, D), lambda i: (0, 0, 0)),            # full activation block
            pl.BlockSpec((depth, D, D), lambda i: (0, 0, 0)),        # all layer Wv (invariant)
        ],
        out_specs=pl.BlockSpec((B, S, D), lambda i: (0, 0, 0)),
        cost_estimate=pl.CostEstimate(flops=flops, transcendentals=0,
                                      bytes_accessed=bytes_accessed),
    )(x, wv)


# ----------------------------- Pure-JAX reference -----------------------------

def _reference(x, wp_stack, tau=1.0):
    """Direct transcription of SimpleTransformerI.forward for a correctness check."""
    B, S, D = x.shape
    scale = 1.0 / (S - 1)
    attn = (jnp.ones((S, S), jnp.float32) - jnp.eye(S, dtype=jnp.float32)) * scale
    for l in range(wp_stack.shape[0]):
        wp = wp_stack[l]
        w0 = 0.5 * (wp + wp.T)
        wv = -w0 @ w0.T
        inner = jnp.einsum('nvd,dk->nvk', x, wv)
        x = tau * jnp.einsum('kv,nvd->nkd', attn, inner) + x
    return x


# ----------------------------- Main -----------------------------

if __name__ == "__main__":
    DIM = 32          # model dim
    DEPTH = 2         # number of SimpleAttentionI layers
    BATCH = 2
    SEQ = 8           # x.size(1) in the PyTorch module
    TAU = 1.0

    key = jax.random.PRNGKey(0)
    k_x, k_wp, k_wk, k_wq = jax.random.split(key, 4)

    x = jax.random.normal(k_x, (BATCH, SEQ, DIM), dtype=jnp.float32)
    # torch.normal(0, 0.1, (dim, dim)) per layer, stacked over depth.
    wp = (0.1 * jax.random.normal(k_wp, (DEPTH, DIM, DIM))).astype(jnp.float32)
    # wk / wq are module parameters but dead code in forward() (key/query are
    # computed then discarded), so they are created here only for parity and
    # never enter the kernel.
    _wk = (0.1 * jax.random.normal(k_wk, (DEPTH, DIM, DIM))).astype(jnp.float32)
    _wq = (0.1 * jax.random.normal(k_wq, (DEPTH, DIM, DIM))).astype(jnp.float32)

    fwd = jax.jit(simple_transformer_forward)
    out = fwd(x, wp)
    jax.block_until_ready(out)
    assert out.shape == (BATCH, SEQ, DIM)

    ref = _reference(x, wp, TAU)
    max_err = float(jnp.max(jnp.abs(out - ref)))
    assert jnp.allclose(out, ref, atol=1e-2, rtol=1e-2), max_err

    print("KERNEL_OK")
</pallas_src>

<mosaic_0001>
module attributes {stable_mosaic.version = 11 : i64} {
  func.func @_transformer_kernel(%arg0: i32, %arg1: memref<2x8x32xf32, #tpu.memory_space<vmem>>, %arg2: memref<2x32x32xbf16, #tpu.memory_space<vmem>>, %arg3: memref<2x8x32xf32, #tpu.memory_space<vmem>>) attributes {dimension_semantics = [#tpu.dimension_semantics<arbitrary>], iteration_bounds = array<i64: 1>, scalar_prefetch = 0 : i64, scratch_operands = 0 : i64, tpu.core_type = #tpu.core_type<tc>, window_params = [{pipeline_mode = #tpu.pipeline_mode<synchronous>, transform_indices = @transform_0, window_bounds = array<i64: 2, 8, 32>}, {pipeline_mode = #tpu.pipeline_mode<synchronous>, transform_indices = @transform_1, window_bounds = array<i64: 2, 32, 32>}, {pipeline_mode = #tpu.pipeline_mode<synchronous>, transform_indices = @transform_2, window_bounds = array<i64: 2, 8, 32>}]} {
    %c0 = arith.constant 0 : index
    %c0_0 = arith.constant 0 : index
    %c0_1 = arith.constant 0 : index
    %0 = vector.load %arg1[%c0, %c0_0, %c0_1] : memref<2x8x32xf32, #tpu.memory_space<vmem>>, vector<2x8x32xf32>
    %c0_2 = arith.constant 0 : index
    %c0_3 = arith.constant 0 : index
    %c0_4 = arith.constant 0 : index
    %1 = vector.load %arg2[%c0_2, %c0_3, %c0_4] : memref<2x32x32xbf16, #tpu.memory_space<vmem>>, vector<1x32x32xbf16>
    %2 = vector.shape_cast %1 : vector<1x32x32xbf16> to vector<32x32xbf16>
    %3 = arith.truncf %0 : vector<2x8x32xf32> to vector<2x8x32xbf16>
    %4 = vector.shape_cast %3 : vector<2x8x32xbf16> to vector<16x32xbf16>
    %cst = arith.constant dense<0.000000e+00> : vector<16x32xf32>
    %5 = tpu.matmul %4, %2, %cst {dimension_numbers = #tpu.dot_dimension_numbers<[1], [0], [0], [1], [0, 0, 1, 1], [], []>} : vector<16x32xbf16>, vector<32x32xbf16>, vector<16x32xf32> -> vector<16x32xf32>
    %6 = vector.shape_cast %5 : vector<16x32xf32> to vector<2x8x32xf32>
    %cst_5 = arith.constant dense<0.000000e+00> : vector<2x32xf32>
    %7 = vector.multi_reduction <add>, %6, %cst_5 [1] : vector<2x8x32xf32> to vector<2x32xf32>
    %8 = vector.shape_cast %7 : vector<2x32xf32> to vector<2x1x32xf32>
    %9 = vector.broadcast %8 : vector<2x1x32xf32> to vector<2x8x32xf32>
    %10 = arith.subf %9, %6 : vector<2x8x32xf32>
    %11 = arith.addf %10, %0 : vector<2x8x32xf32>
    %c1 = arith.constant 1 : index
    %c0_6 = arith.constant 0 : index
    %c0_7 = arith.constant 0 : index
    %12 = vector.load %arg2[%c1, %c0_6, %c0_7] : memref<2x32x32xbf16, #tpu.memory_space<vmem>>, vector<1x32x32xbf16>
    %13 = vector.shape_cast %12 : vector<1x32x32xbf16> to vector<32x32xbf16>
    %14 = arith.truncf %11 : vector<2x8x32xf32> to vector<2x8x32xbf16>
    %15 = vector.shape_cast %14 : vector<2x8x32xbf16> to vector<16x32xbf16>
    %cst_8 = arith.constant dense<0.000000e+00> : vector<16x32xf32>
    %16 = tpu.matmul %15, %13, %cst_8 {dimension_numbers = #tpu.dot_dimension_numbers<[1], [0], [0], [1], [0, 0, 1, 1], [], []>} : vector<16x32xbf16>, vector<32x32xbf16>, vector<16x32xf32> -> vector<16x32xf32>
    %17 = vector.shape_cast %16 : vector<16x32xf32> to vector<2x8x32xf32>
    %cst_9 = arith.constant dense<0.000000e+00> : vector<2x32xf32>
    %18 = vector.multi_reduction <add>, %17, %cst_9 [1] : vector<2x8x32xf32> to vector<2x32xf32>
    %19 = vector.shape_cast %18 : vector<2x32xf32> to vector<2x1x32xf32>
    %20 = vector.broadcast %19 : vector<2x1x32xf32> to vector<2x8x32xf32>
    %21 = arith.subf %20, %17 : vector<2x8x32xf32>
    %22 = arith.addf %21, %11 : vector<2x8x32xf32>
    %c0_10 = arith.constant 0 : index
    %c0_11 = arith.constant 0 : index
    %c0_12 = arith.constant 0 : index
    %23 = vector.load %arg3[%c0_10, %c0_11, %c0_12] : memref<2x8x32xf32, #tpu.memory_space<vmem>>, vector<2x8x32xf32>
    tpu.vector_store %arg3[%c0_10, %c0_11, %c0_12], %22 {strides = array<i32>} : memref<2x8x32xf32, #tpu.memory_space<vmem>>, vector<2x8x32xf32>,
    return
  }
  func.func @transform_0(%arg0: i32) -> (i32, i32, i32) {
    %c0_i32 = arith.constant 0 : i32
    %c0_i32_0 = arith.constant 0 : i32
    %c0_i32_1 = arith.constant 0 : i32
    %c0_i32_2 = arith.constant 0 : i32
    return %c0_i32, %c0_i32_0, %c0_i32_1 : i32, i32, i32
  }
  func.func @transform_1(%arg0: i32) -> (i32, i32, i32) {
    %c0_i32 = arith.constant 0 : i32
    %c0_i32_0 = arith.constant 0 : i32
    %c0_i32_1 = arith.constant 0 : i32
    %c0_i32_2 = arith.constant 0 : i32
    return %c0_i32, %c0_i32_0, %c0_i32_1 : i32, i32, i32
  }
  func.func @transform_2(%arg0: i32) -> (i32, i32, i32) {
    %c0_i32 = arith.constant 0 : i32
    %c0_i32_0 = arith.constant 0 : i32
    %c0_i32_1 = arith.constant 0 : i32
    %c0_i32_2 = arith.constant 0 : i32
    return %c0_i32, %c0_i32_0, %c0_i32_1 : i32, i32, i32
  }
}

</mosaic_0001>

<llo_original>
// kernel: simple_transformer_forward.1
$region0: #{simple_transformer_forward.1}
  #allocation0 [shape = 'u32[]', space=smem, size = 0x4, offset = 0x4, fixed_abs, tag = 'smem constant byte address 0x4 - core index']
  #allocation1 [shape = 'u32[144,128]{1,0:T(1,128)}', space=vmem, size = 0x12000, scoped, tag = 'internal scratch']
  %s0 = inlined_call_operand.vmem [shape: f32[2,8,32], index: 0, kind: input, shape index: {}]
  %s1 = inlined_call_operand.vmem [shape: bf16[2,32,32], index: 1, kind: input, shape index: {}]
  %s2 = inlined_call_operand.hbm [shape: f32[2,8,32], index: 2, kind: output, shape index: {}]
  %s3 = sld [smem:[#allocation0]]
  $region18: #{simple_transformer_forward.1} parent=0
    _
  %s5 = ssub.s32 1, %s3
  %s6 = scalar_select 0, %s5, %s3
  $region1: #{simple_transformer_forward.1} parent=0
    #allocation2 [shape = 'u8[8192]{0}', space=vmem, size = 0x2000, scoped, tag = 'output window, operand 0, single buffered']
    #allocation3 [shape = 's32[1]{0}', space=sflag, size = 0x4, scoped, tag = 'scoped memory for simple_transformer_forward.1']
    %7 = vsyncpa [#allocation3], 0
    // Predicated region
    $region2: #{simple_transformer_forward.1} parent=1 // pred_check
      _
    $region3: #{simple_transformer_forward.1} parent=1 // pred_check_branch
      %9 = sbr.rel (0) target = $region5
    $region4: #{simple_transformer_forward.1} parent=1 // pred_region
      _
    $region5: #{simple_transformer_forward.1} parent=1 // pred_fallthru
      _
    // Predicated region
    $region6: #{simple_transformer_forward.1} parent=1 // pred_check
      _
    $region7: #{simple_transformer_forward.1} parent=1 // pred_check_branch
      %11 = sbr.rel (0) target = $region9
    $region8: #{simple_transformer_forward.1} parent=1 // pred_region
      _
    $region9: #{simple_transformer_forward.1} parent=1 // pred_fallthru
      _
    %v13 = vld [vmem:[%s0] sm:$0xff]
    %v14 = vld [vmem:[%s0 + $0x8] sm:$0xff]
    %v15 = vld [vmem:[%s1] sm:$0xf]
    %v16 = vld [vmem:[%s1 + $0x4] sm:$0xf]
    %v17 = vld [vmem:[%s1 + $0x8] sm:$0xf]
    %v18 = vld [vmem:[%s1 + $0xc] sm:$0xf]
    %v19 = vpack.c.bf16 %v13, %v13
    %v20 = vpack.c.bf16 %v14, %v14
    %v23 = vunpack.c.l.b16 %v19
    %v24 = vunpack.c.l.b16 %v20
    %v25 = vpack.c.b16 %v24, %v23
    %v30 = vunpack.c.l.b16 %v15
    %v31 = vunpack.c.l.b16 %v16
    %v32 = vunpack.c.l.b16 %v17
    %v33 = vunpack.c.l.b16 %v18
    %v34 = vpack.c.b16 %v31, %v30
    %v35 = vpack.c.b16 %v33, %v32
    %vm38 = vcmask 261120
    %v40 = vsel %vm38, %v25, 0
    %42 = vmatprep.subr.bf16.mxu0 0
    %43 = vmatpush1.bf16.msra.mxu0 %v34
    %44 = vmatprep.subr.bf16.mxu0 0
    %45 = vmatpush1.bf16.msra.mxu0 %v35
    %46 = vmatprep.subr.bf16.mxu0 0
    %47 = vmatpush1.bf16.msra.mxu0 0
    %48 = vmatprep.subr.bf16.mxu0 0
    %49 = vmatpush1.bf16.msra.mxu0 0
    %50 = vmatprep.subr.bf16.mxu0 0
    %51 = vmatpush1.bf16.msra.mxu0 0
    %52 = vmatprep.subr.bf16.mxu0 0
    %53 = vmatpush1.bf16.msra.mxu0 0
    %54 = vmatprep.subr.bf16.mxu0 0
    %55 = vmatpush1.bf16.msra.mxu0 0
    %56 = vmatprep.subr.bf16.mxu0 0
    %57 = vmatpush1.bf16.msra.mxu0 0
    %58 = vmatprep.subr.bf16.mxu0 0
    %59 = vmatpush1.bf16.msra.mxu0 0
    %60 = vmatprep.subr.bf16.mxu0 0
    %61 = vmatpush1.bf16.msra.mxu0 0
    %62 = vmatprep.subr.bf16.mxu0 0
    %63 = vmatpush1.bf16.msra.mxu0 0
    %64 = vmatprep.subr.bf16.mxu0 0
    %65 = vmatpush1.bf16.msra.mxu0 0
    %66 = vmatprep.subr.bf16.mxu0 0
    %67 = vmatpush1.bf16.msra.mxu0 0
    %68 = vmatprep.subr.bf16.mxu0 0
    %69 = vmatpush1.bf16.msra.mxu0 0
    %70 = vmatprep.subr.bf16.mxu0 0
    %71 = vmatpush1.bf16.msra.mxu0 0
    %72 = vmatprep.subr.bf16.mxu0 0
    %73 = vmatpush1.bf16.msra.mxu0 0
    %74 = vmatprep.mubr.bf16.mxu0 0
    %75 = vmatmul.mubr.bf16.gmra.mrb[0].mxu0 %v40
    %v76 = vpop.f32.mrb[0].mxu0
    %v77 = vadd.f32 0.0, %v76
    %v78 = vpop.f32.mrb[0].mxu0
    %v79 = vpop.f32.mrb[0].mxu0
    %v80 = vadd.f32 0.0, %v79
    %v81 = vpop.f32.mrb[0].mxu0
    %82 = vdwg.mxu0
    %v83 = vsel %vm38, %v77, 0.0
    %v84 = vrot.slane %v83, 4
    %v85 = vadd.f32 %v83, %v84
    %v86 = vrot.slane %v85, 2
    %v87 = vadd.f32 %v85, %v86
    %v88 = vrot.slane %v87, 1
    %v89 = vadd.f32 %v87, %v88
    %v90 = vsel %vm38, %v80, 0.0
    %v91 = vrot.slane %v90, 4
    %v92 = vadd.f32 %v90, %v91
    %v93 = vrot.slane %v92, 2
    %v94 = vadd.f32 %v92, %v93
    %v95 = vrot.slane %v94, 1
    %v96 = vadd.f32 %v94, %v95
    %v97 = vsub.f32 %v89, %v77
    %v98 = vsub.f32 %v96, %v80
    %v99 = vadd.f32 %v97, %v13
    %v100 = vadd.f32 %v98, %v14
    %s101 = scalar_lea.vmem %s1, 16
    %v102 = vld [vmem:[%s101] sm:$0xf]
    %v103 = vld [vmem:[%s101 + $0x4] sm:$0xf]
    %v104 = vld [vmem:[%s101 + $0x8] sm:$0xf]
    %v105 = vld [vmem:[%s101 + $0xc] sm:$0xf]
    %v106 = vpack.c.bf16 %v99, %v99
    %v107 = vpack.c.bf16 %v100, %v100
    %v110 = vunpack.c.l.b16 %v106
    %v111 = vunpack.c.l.b16 %v107
    %v112 = vpack.c.b16 %v111, %v110
    %v117 = vunpack.c.l.b16 %v102
    %v118 = vunpack.c.l.b16 %v103
    %v119 = vunpack.c.l.b16 %v104
    %v120 = vunpack.c.l.b16 %v105
    %v121 = vpack.c.b16 %v118, %v117
    %v122 = vpack.c.b16 %v120, %v119
    %v126 = vsel %vm38, %v112, 0
    %128 = vmatprep.subr.bf16.mxu0 0
    %129 = vmatpush1.bf16.msra.mxu0 %v121
    %130 = vmatprep.subr.bf16.mxu0 0
    %131 = vmatpush1.bf16.msra.mxu0 %v122
    %132 = vmatprep.subr.bf16.mxu0 0
    %133 = vmatpush1.bf16.msra.mxu0 0
    %134 = vmatprep.subr.bf16.mxu0 0
    %135 = vmatpush1.bf16.msra.mxu0 0
    %136 = vmatprep.subr.bf16.mxu0 0
    %137 = vmatpush1.bf16.msra.mxu0 0
    %138 = vmatprep.subr.bf16.mxu0 0
    %139 = vmatpush1.bf16.msra.mxu0 0
    %140 = vmatprep.subr.bf16.mxu0 0
    %141 = vmatpush1.bf16.msra.mxu0 0
    %142 = vmatprep.subr.bf16.mxu0 0
    %143 = vmatpush1.bf16.msra.mxu0 0
    %144 = vmatprep.subr.bf16.mxu0 0
    %145 = vmatpush1.bf16.msra.mxu0 0
    %146 = vmatprep.subr.bf16.mxu0 0
    %147 = vmatpush1.bf16.msra.mxu0 0
    %148 = vmatprep.subr.bf16.mxu0 0
    %149 = vmatpush1.bf16.msra.mxu0 0
    %150 = vmatprep.subr.bf16.mxu0 0
    %151 = vmatpush1.bf16.msra.mxu0 0
    %152 = vmatprep.subr.bf16.mxu0 0
    %153 = vmatpush1.bf16.msra.mxu0 0
    %154 = vmatprep.subr.bf16.mxu0 0
    %155 = vmatpush1.bf16.msra.mxu0 0
    %156 = vmatprep.subr.bf16.mxu0 0
    %157 = vmatpush1.bf16.msra.mxu0 0
    %158 = vmatprep.subr.bf16.mxu0 0
    %159 = vmatpush1.bf16.msra.mxu0 0
    %160 = vmatprep.mubr.bf16.mxu0 0
    %161 = vmatmul.mubr.bf16.gmra.mrb[0].mxu0 %v126
    %v162 = vpop.f32.mrb[0].mxu0
    %v163 = vadd.f32 0.0, %v162
    %v164 = vpop.f32.mrb[0].mxu0
    %v165 = vpop.f32.mrb[0].mxu0
    %v166 = vadd.f32 0.0, %v165
    %v167 = vpop.f32.mrb[0].mxu0
    %168 = vdwg.mxu0
    %v169 = vsel %vm38, %v163, 0.0
    %v170 = vrot.slane %v169, 4
    %v171 = vadd.f32 %v169, %v170
    %v172 = vrot.slane %v171, 2
    %v173 = vadd.f32 %v171, %v172
    %v174 = vrot.slane %v173, 1
    %v175 = vadd.f32 %v173, %v174
    %v176 = vsel %vm38, %v166, 0.0
    %v177 = vrot.slane %v176, 4
    %v178 = vadd.f32 %v176, %v177
    %v179 = vrot.slane %v178, 2
    %v180 = vadd.f32 %v178, %v179
    %v181 = vrot.slane %v180, 1
    %v182 = vadd.f32 %v180, %v181
    %v183 = vsub.f32 %v175, %v163
    %v184 = vsub.f32 %v182, %v166
    %v185 = vadd.f32 %v183, %v99
    %v186 = vadd.f32 %v184, %v100
    %187 = vst.msk [vmem:[#allocation2] sm:$0xff] %vm38, %v185
    %188 = vst.msk [vmem:[#allocation2 + $0x8] sm:$0xff] %vm38, %v186
    // Predicated region
    $region10: #{simple_transformer_forward.1} parent=1 // pred_check
      _
    $region11: #{simple_transformer_forward.1} parent=1 // pred_check_branch
      %190 = sbr.rel (0) target = $region13
    $region12: #{simple_transformer_forward.1} parent=1 // pred_region
      %s192 = ssub.s32 256, 256
      %193 = vsyncadd [#allocation3], %s192
      %s194 = sshll.u32 [#allocation2], 4
      %s195 = int_to_ptr.vmem [resolvable:$true] %s194
      %200 = dma.vmem_to_hbm [thread:$0]  %s195, 256, %s2, [#allocation3], 128, 128, 8
    $region13: #{simple_transformer_forward.1} parent=1 // pred_fallthru
      _
    // Predicated region
    $region14: #{simple_transformer_forward.1} parent=1 // pred_check
      _
    $region15: #{simple_transformer_forward.1} parent=1 // pred_check_branch
      %202 = sbr.rel (0) target = $region17
    $region16: #{simple_transformer_forward.1} parent=1 // pred_region
      %203 = dma.done [#allocation3], 256
    $region17: #{simple_transformer_forward.1} parent=1 // pred_fallthru
      _
    %204 = vsyncpa [#allocation3], 1

</llo_original>
